<compile_context>
chip_gen: v7x
topology: tpu7x:2x2x1
jax: 0.10.0
libtpu: 0.0.40
codegen_flags: <defaults>
</compile_context>

<pallas_src>
import jax
import jax.numpy as jnp
from jax.experimental import pallas as pl
from jax.experimental.pallas import tpu as pltpu


# ---------------------------------------------------------------------------
# Generation-aware VMEM budget
# ---------------------------------------------------------------------------
def _vmem_limit_bytes():
    phys = 64 * 1024 * 1024          # conservative default (v7x physical VMEM)
    try:
        info = pltpu.get_tpu_info()
        phys = int(getattr(info, "vmem_capacity_bytes", phys))
    except Exception:
        pass
    # ~3/4 of physical: 48 MiB on v7x (64 MiB), 96 MiB on v5e/v6e (128 MiB).
    return min((phys * 3) // 4, 100 * 1024 * 1024)


def _divisor_tile(n, preferred, align):
    """Largest multiple of `align` dividing n and <= preferred, else full n."""
    best = None
    t = align
    limit = min(n, preferred)
    while t <= limit:
        if n % t == 0:
            best = t
        t += align
    return best if best is not None else n


def _main_working_set(tm, tk, N, H, PH, P, xw_resident):
    """Approximate VMEM footprint (bytes) of one stage-2 grid step."""
    bs = 2 * tm * tk * 2                                      # adj bf16, 2 bufs
    bs += (2 * N * H * 2) if xw_resident else (2 * tk * H * 2)  # xw bf16
    bs += 2 * (H * PH + PH * P + H + PH + P) * 4              # weights/biases
    bs += 2 * (tm * H + tm * P) * 4                           # h, z out tiles
    bs += tm * H * 4                                          # f32 accumulator
    return bs


# ---------------------------------------------------------------------------
# Stage 1: xw = feat @ W_enc   (row-tiled; stored bf16 for the main MXU loop)
# ---------------------------------------------------------------------------
def _feat_proj_kernel(feat_ref, wenc_ref, xw_ref):
    xw = jnp.dot(feat_ref[...].astype(jnp.bfloat16),
                 wenc_ref[...].astype(jnp.bfloat16),
                 preferred_element_type=jnp.float32)
    xw_ref[...] = xw.astype(xw_ref.dtype)


def _feat_proj(feat, wenc, tm, vmem_limit):
    N, F = feat.shape
    H = wenc.shape[1]
    flops = 2 * N * F * H
    bytes_accessed = 4 * N * F + 4 * F * H + 2 * N * H
    return pl.pallas_call(
        _feat_proj_kernel,
        grid=(N // tm,),
        in_specs=[
            pl.BlockSpec((tm, F), lambda i: (i, 0)),
            pl.BlockSpec((F, H), lambda i: (0, 0)),
        ],
        out_specs=pl.BlockSpec((tm, H), lambda i: (i, 0)),
        out_shape=jax.ShapeDtypeStruct((N, H), jnp.bfloat16),
        compiler_params=pltpu.CompilerParams(
            dimension_semantics=("parallel",),
            vmem_limit_bytes=vmem_limit),
        cost_estimate=pl.CostEstimate(
            flops=flops, transcendentals=0, bytes_accessed=bytes_accessed),
    )(feat, wenc)


# ---------------------------------------------------------------------------
# Stage 2: h = adj @ xw + b_enc ; z = PReLU(h @ W1 + b1) @ W2 + b2   (fused)
# ---------------------------------------------------------------------------
def _make_main_kernel(tk, xw_resident):
    def kernel(adj_ref, xw_ref, benc_ref, w1_ref, b1_ref, alpha_ref,
               w2_ref, b2_ref, h_ref, z_ref, acc_ref):
        k = pl.program_id(1)

        @pl.when(k == 0)
        def _():
            acc_ref[...] = jnp.zeros_like(acc_ref)

        # adj is already bf16 (no in-kernel cast); xw is bf16.
        if xw_resident:
            start = pl.multiple_of(k * tk, tk)
            xw_tile = xw_ref[pl.ds(start, tk), :]
        else:
            xw_tile = xw_ref[...]

        acc_ref[...] += jnp.dot(adj_ref[...], xw_tile,
                                preferred_element_type=jnp.float32)

        @pl.when(k == pl.num_programs(1) - 1)
        def _():
            h = acc_ref[...] + benc_ref[...]              # f32 epilogue
            h_ref[...] = h.astype(h_ref.dtype)
            # rep_projector fused here so the h tile never re-reads from HBM.
            hid = jnp.dot(h.astype(jnp.bfloat16),
                          w1_ref[...].astype(jnp.bfloat16),
                          preferred_element_type=jnp.float32) + b1_ref[...]
            a = alpha_ref[0]                              # PReLU slope (SMEM)
            act = jnp.where(hid > 0, hid, a * hid)        # f32 elementwise
            z = jnp.dot(act.astype(jnp.bfloat16),
                        w2_ref[...].astype(jnp.bfloat16),
                        preferred_element_type=jnp.float32) + b2_ref[...]
            z_ref[...] = z.astype(z_ref.dtype)

    return kernel


def contra_forward(feat, adj, params, *, tm=None, tk=None):
    """Fused Pallas forward of Contra: returns (h, z)."""
    wenc, benc, w1, b1, alpha, w2, b2 = params
    N, F = feat.shape
    H = wenc.shape[1]
    PH = w1.shape[1]
    P = w2.shape[1]
    assert adj.shape == (N, N)

    # adj should ideally already be bf16 (stored at creation); cast if not.
    if adj.dtype != jnp.bfloat16:
        adj = adj.astype(jnp.bfloat16)

    vmem_limit = _vmem_limit_bytes()
    budget = int(vmem_limit * 0.85)

    # Hold xw fully VMEM-resident if its (double-buffered) bf16 footprint is
    # comfortably small; otherwise stream (tk, H) k-tiles.
    xw_resident = (2 * N * H * 2) <= vmem_limit // 3

    if tm is None:
        pref_tm = 512
        if N // 2 >= 8:
            pref_tm = min(pref_tm, N // 2)   # >= 2 row blocks (v7x: 2 TCs)
        tm = _divisor_tile(N, pref_tm, 8)
    if tk is None:
        # Small-N fast path first (tk = N: no reduction loop), then large tiles.
        for cand in (N, 2048, 1024, 512, 256, 128):
            if cand <= N and N % cand == 0 and \
               _main_working_set(tm, cand, N, H, PH, P, xw_resident) <= budget:
                tk = cand
                break
        if tk is None:
            tk = _divisor_tile(N, 128, 128)
    assert N % tm == 0 and N % tk == 0

    xw = _feat_proj(feat, wenc, tm, vmem_limit)              # (N, H) bf16

    grid = (N // tm, N // tk)   # reduction axis last, by convention

    flops = 2 * N * N * H + 2 * N * (H * PH + PH * P)
    adj_bytes = 2 * N * N                                    # bf16 adj, once
    xw_bytes = 2 * N * H if xw_resident else 2 * N * H * (N // tm)
    bytes_accessed = (adj_bytes + xw_bytes
                      + 4 * (N * H + N * P)                  # h, z outputs
                      + 4 * (H * PH + PH * P + H + PH + P + 1))

    if xw_resident:
        xw_spec = pl.BlockSpec((N, H), lambda i, k: (0, 0))  # fetched once
    else:
        xw_spec = pl.BlockSpec((tk, H), lambda i, k: (k, 0))

    in_specs = [
        pl.BlockSpec((tm, tk), lambda i, k: (i, k)),             # adj tile bf16
        xw_spec,                                                 # xw (bf16)
        pl.BlockSpec((1, H), lambda i, k: (0, 0)),               # b_enc
        pl.BlockSpec((H, PH), lambda i, k: (0, 0)),              # W1
        pl.BlockSpec((1, PH), lambda i, k: (0, 0)),              # b1
        pl.BlockSpec(memory_space=pltpu.MemorySpace.SMEM),       # PReLU alpha
        pl.BlockSpec((PH, P), lambda i, k: (0, 0)),              # W2
        pl.BlockSpec((1, P), lambda i, k: (0, 0)),               # b2
    ]
    out_specs = (
        pl.BlockSpec((tm, H), lambda i, k: (i, 0)),              # h
        pl.BlockSpec((tm, P), lambda i, k: (i, 0)),              # z
    )
    out_shape = (
        jax.ShapeDtypeStruct((N, H), jnp.float32),
        jax.ShapeDtypeStruct((N, P), jnp.float32),
    )

    return pl.pallas_call(
        _make_main_kernel(tk, xw_resident),
        grid=grid,
        in_specs=in_specs,
        out_specs=out_specs,
        out_shape=out_shape,
        scratch_shapes=[pltpu.VMEM((tm, H), jnp.float32)],       # f32 accum
        compiler_params=pltpu.CompilerParams(
            dimension_semantics=("parallel", "arbitrary"),
            vmem_limit_bytes=vmem_limit),
        cost_estimate=pl.CostEstimate(
            flops=flops, transcendentals=0, bytes_accessed=bytes_accessed),
    )(adj, xw, benc, w1, b1, alpha, w2, b2)


# ---------------------------------------------------------------------------
# Parameter init (mirrors the module's __init__; cluster_layer unused in fwd)
# ---------------------------------------------------------------------------
def init_params(key, in_feat, hidden_size, projection_size,
                projection_hidden_size, n_cluster):
    ks = jax.random.split(key, 8)
    wenc = jax.random.normal(ks[0], (in_feat, hidden_size), jnp.float32) * 0.1
    benc = jax.random.normal(ks[1], (1, hidden_size), jnp.float32) * 0.01
    w1 = jax.random.normal(ks[2], (hidden_size, projection_hidden_size), jnp.float32) * 0.1
    b1 = jax.random.normal(ks[3], (1, projection_hidden_size), jnp.float32) * 0.01
    alpha = jnp.full((1,), 0.25, jnp.float32)            # nn.PReLU() default
    w2 = jax.random.normal(ks[4], (projection_hidden_size, projection_size), jnp.float32) * 0.1
    b2 = jax.random.normal(ks[5], (1, projection_size), jnp.float32) * 0.01
    std = (2.0 / (n_cluster + hidden_size)) ** 0.5       # xavier-normal-ish
    cluster_layer = jax.random.normal(ks[6], (n_cluster, hidden_size), jnp.float32) * std
    return (wenc, benc, w1, b1, alpha, w2, b2), cluster_layer


if __name__ == "__main__":
    # Small but lane-dense shapes: last dims are multiples of 128 (unmasked
    # stores, full MXU lanes), rows a multiple of the sublane tile.
    N = 512            # number of graph nodes
    IN_FEAT = 128      # input feature dim
    HIDDEN = 128       # hidden_size
    PROJ_HIDDEN = 128  # projection_hidden_size
    PROJ = 128         # projection_size
    N_CLUSTER = 8      # n_cluster (cluster_layer not used in forward)

    key = jax.random.PRNGKey(0)
    k_feat, k_adj, k_par = jax.random.split(key, 3)

    feat = jax.random.normal(k_feat, (N, IN_FEAT), jnp.float32)
    adj_raw = jax.random.uniform(k_adj, (N, N), jnp.float32)
    adj = adj_raw / jnp.sum(adj_raw, axis=1, keepdims=True)   # row-normalized
    # Pre-convert adj once at creation so the per-call hot loop streams bf16.
    adj_bf16 = adj.astype(jnp.bfloat16)

    params, cluster_layer = init_params(
        k_par, IN_FEAT, HIDDEN, PROJ, PROJ_HIDDEN, N_CLUSTER)

    # 1) auto-tiled path (small-N fast path: tk == N, single k step, resident xw)
    h, z = contra_forward(feat, adj_bf16, params)
    h = jax.block_until_ready(h)
    z = jax.block_until_ready(z)

    # 2) forced multi-step reduction path (exercises accumulator + xw slicing)
    h2, z2 = contra_forward(feat, adj_bf16, params, tm=128, tk=128)
    h2 = jax.block_until_ready(h2)
    z2 = jax.block_until_ready(z2)

    # Pure-JAX reference with matching precision (bf16 MXU inputs, f32 accum).
    wenc, benc, w1, b1, alpha, w2, b2 = params
    bf = jnp.bfloat16
    xw_ref = jnp.dot(feat.astype(bf), wenc.astype(bf),
                     preferred_element_type=jnp.float32).astype(bf)
    h_ref = jnp.dot(adj_bf16, xw_ref,
                    preferred_element_type=jnp.float32) + benc
    hid_ref = jnp.dot(h_ref.astype(bf), w1.astype(bf),
                      preferred_element_type=jnp.float32) + b1
    act_ref = jnp.where(hid_ref > 0, hid_ref, alpha[0] * hid_ref)
    z_ref = jnp.dot(act_ref.astype(bf), w2.astype(bf),
                    preferred_element_type=jnp.float32) + b2

    assert jnp.allclose(h, h_ref, atol=2e-3, rtol=2e-3), "h mismatch"
    assert jnp.allclose(z, z_ref, atol=2e-3, rtol=2e-3), "z mismatch"
    assert jnp.allclose(h2, h_ref, atol=2e-3, rtol=2e-3), "h (k-tiled) mismatch"
    assert jnp.allclose(z2, z_ref, atol=2e-3, rtol=2e-3), "z (k-tiled) mismatch"

    print("KERNEL_OK")
</pallas_src>

<mosaic_0001>
module attributes {stable_mosaic.version = 11 : i64} {
  func.func @_feat_proj_kernel(%arg0: i32, %arg1: memref<256x128xf32, #tpu.memory_space<vmem>>, %arg2: memref<128x128xf32, #tpu.memory_space<vmem>>, %arg3: memref<256x128xbf16, #tpu.memory_space<vmem>>) attributes {dimension_semantics = [#tpu.dimension_semantics<parallel>], iteration_bounds = array<i64: 2>, scalar_prefetch = 0 : i64, scratch_operands = 0 : i64, tpu.core_type = #tpu.core_type<tc>, window_params = [{transform_indices = @transform_0, window_bounds = array<i64: 256, 128>}, {pipeline_mode = #tpu.pipeline_mode<synchronous>, transform_indices = @transform_1, window_bounds = array<i64: 128, 128>}, {transform_indices = @transform_2, window_bounds = array<i64: 256, 128>}]} {
    %c0 = arith.constant 0 : index
    %c0_0 = arith.constant 0 : index
    %0 = vector.load %arg1[%c0, %c0_0] : memref<256x128xf32, #tpu.memory_space<vmem>>, vector<256x128xf32>
    %1 = arith.truncf %0 : vector<256x128xf32> to vector<256x128xbf16>
    %c0_1 = arith.constant 0 : index
    %c0_2 = arith.constant 0 : index
    %2 = vector.load %arg2[%c0_1, %c0_2] : memref<128x128xf32, #tpu.memory_space<vmem>>, vector<128x128xf32>
    %3 = arith.truncf %2 : vector<128x128xf32> to vector<128x128xbf16>
    %cst = arith.constant dense<0.000000e+00> : vector<256x128xf32>
    %4 = tpu.matmul %1, %3, %cst {dimension_numbers = #tpu.dot_dimension_numbers<[1], [0], [0], [1], [0, 0, 1, 1], [], []>} : vector<256x128xbf16>, vector<128x128xbf16>, vector<256x128xf32> -> vector<256x128xf32>
    %5 = arith.truncf %4 : vector<256x128xf32> to vector<256x128xbf16>
    %c0_3 = arith.constant 0 : index
    %c0_4 = arith.constant 0 : index
    %6 = vector.load %arg3[%c0_3, %c0_4] : memref<256x128xbf16, #tpu.memory_space<vmem>>, vector<256x128xbf16>
    tpu.vector_store %arg3[%c0_3, %c0_4], %5 {strides = array<i32>} : memref<256x128xbf16, #tpu.memory_space<vmem>>, vector<256x128xbf16>,
    return
  }
  func.func @transform_0(%arg0: i32) -> (i32, i32) {
    %c0_i32 = arith.constant 0 : i32
    %c0_i32_0 = arith.constant 0 : i32
    return %arg0, %c0_i32 : i32, i32
  }
  func.func @transform_1(%arg0: i32) -> (i32, i32) {
    %c0_i32 = arith.constant 0 : i32
    %c0_i32_0 = arith.constant 0 : i32
    %c0_i32_1 = arith.constant 0 : i32
    return %c0_i32, %c0_i32_0 : i32, i32
  }
  func.func @transform_2(%arg0: i32) -> (i32, i32) {
    %c0_i32 = arith.constant 0 : i32
    %c0_i32_0 = arith.constant 0 : i32
    return %arg0, %c0_i32 : i32, i32
  }
}

</mosaic_0001>

<llo_original>
// kernel: tpu_custom_call.1
$region0: #{tpu_custom_call.1}
  #allocation0 [shape = 'u32[]', space=smem, size = 0x4, offset = 0x4, fixed_abs, tag = 'smem constant byte address 0x4 - core index']
  #allocation1 [shape = 'u32[144,128]{1,0:T(1,128)}', space=vmem, size = 0x12000, scoped, tag = 'internal scratch']
  %s0 = inlined_call_operand.hbm [shape: f32[512,128], index: 0, kind: input, shape index: {}]
  %s1 = inlined_call_operand.hbm [shape: f32[128,128], index: 1, kind: input, shape index: {}]
  %s2 = inlined_call_operand.hbm [shape: bf16[512,128], index: 2, kind: output, shape index: {}]
  %s3 = sld [smem:[#allocation0]]
  $region49: #{tpu_custom_call.1} parent=0
    _
  %s5 = ssub.s32 1, %s3
  %s6 = scalar_select 0, %s5, %s3
  $region1: #{tpu_custom_call.1} parent=0
    #allocation2 [shape = 'u8[262144]{0}', space=vmem, size = 0x40000, scoped, tag = 'input window, operand 0']
    #allocation3 [shape = 's32[2]{0}', space=sflag, size = 0x8, scoped, tag = 'scoped memory for tpu_custom_call.1']
    #allocation4 [shape = 's32[2]{0}', space=sflag, size = 0x8, scoped, tag = 'scoped memory for tpu_custom_call.1']
    #allocation5 [shape = 'u8[65536]{0}', space=vmem, size = 0x10000, scoped, tag = 'input window, operand 1, single buffered']
    #allocation6 [shape = 's32[1]{0}', space=sflag, size = 0x4, scoped, tag = 'scoped memory for tpu_custom_call.1']
    #allocation7 [shape = 'u8[131072]{0}', space=vmem, size = 0x20000, scoped, tag = 'output window, operand 0']
    %7 = vsyncpa [#allocation3], 0
    %s8 = scalar_lea.sflag [#allocation3], 1
    %9 = vsyncpa %s8, 0
    %10 = vsyncpa [#allocation6], 0
    %11 = vsyncpa [#allocation4], 0
    %s12 = scalar_lea.sflag [#allocation4], 1
    %13 = vsyncpa %s12, 0
    loop: start=0, step=1, limit=4
    $region2: #{tpu_custom_call.1} parent=1 // loop_pre_header
      _
    $region3: #{tpu_custom_call.1} parent=1 // loop_header
      %s15 = sphi 0, %s19
      %p16 = scmp.ge.s32.totalorder %s15, 4
      %s25 = sphi 0, %s27
      %s28 = sphi 0, %s25
      %s29 = sphi 0, %s28
      %s45 = sphi 0, %s29
      %s49 = sphi 0, %s49
      %s51 = sphi 0, %s49
      %s52 = sphi 0, %s51
      %s66 = sphi 0, %s52
      %s72 = sphi 0, %s74
      %s75 = sphi 0, %s72
      %s76 = sphi 0, %s75
      %s92 = sphi 0, %s76
    $region4: #{tpu_custom_call.1} parent=1 // loop_header_branch
      %18 = sbr.rel (%p16) target = $region8
    $region5: #{tpu_custom_call.1} parent=1 // loop_body
      %s20 = ssub.s32 %s15, 1
      %s21 = ssub.s32 %s15, 2
      %s22 = sadd.s32 %s15, 1
      %s23 = ssub.s32 %s15, %s22
      %p24 = scmp.eq.s32.totalorder %s23, 0
      %s26 = sadd.s32 %s25, 1
      %s27 = scalar_select %p24, %s25, %s26
      %p30 = pneg %p24
      %p31 = scmp.eq.s32.totalorder %s15, 1
      %p32 = por %p30, %p31
      %p33 = scmp.ne.s32.totalorder %s25, %s28
      %p34 = scmp.eq.s32.totalorder %s15, 0
      %p35 = por %p33, %p34
      %p36 = scmp.ne.s32.totalorder %s25, %s28
      %p37 = scmp.eq.s32.totalorder %s20, 1
      %p38 = por %p36, %p37
      %p39 = scmp.ne.s32.totalorder %s28, %s29
      %p40 = scmp.eq.s32.totalorder %s20, 0
      %p41 = por %p39, %p40
      %p42 = scmp.ne.s32.totalorder %s28, %s29
      %p43 = scmp.eq.s32.totalorder %s21, 1
      %p44 = por %p42, %p43
      %p46 = scmp.ne.s32.totalorder %s29, %s45
      %p47 = scmp.eq.s32.totalorder %s21, 0
      %p48 = por %p46, %p47
      %s50 = sadd.s32 %s49, 1
      %p53 = scmp.eq.s32.totalorder %s15, 1
      %p54 = scmp.ne.s32.totalorder %s49, %s51
      %p55 = scmp.eq.s32.totalorder %s15, 0
      %p56 = por %p54, %p55
      %p57 = scmp.ne.s32.totalorder %s49, %s51
      %p58 = scmp.eq.s32.totalorder %s20, 1
      %p59 = por %p57, %p58
      %p60 = scmp.ne.s32.totalorder %s51, %s52
      %p61 = scmp.eq.s32.totalorder %s20, 0
      %p62 = por %p60, %p61
      %p63 = scmp.ne.s32.totalorder %s51, %s52
      %p64 = scmp.eq.s32.totalorder %s21, 1
      %p65 = por %p63, %p64
      %p67 = scmp.ne.s32.totalorder %s52, %s66
      %p68 = scmp.eq.s32.totalorder %s21, 0
      %p69 = por %p67, %p68
      %s70 = ssub.s32 %s15, %s22
      %p71 = scmp.eq.s32.totalorder %s70, 0
      %s73 = sadd.s32 %s72, 1
      %s74 = scalar_select %p71, %s72, %s73
      %p77 = pneg %p71
      %p78 = scmp.eq.s32.totalorder %s15, 1
      %p79 = por %p77, %p78
      %p80 = scmp.ne.s32.totalorder %s72, %s75
      %p81 = scmp.eq.s32.totalorder %s15, 0
      %p82 = por %p80, %p81
      %p83 = scmp.ne.s32.totalorder %s72, %s75
      %p84 = scmp.eq.s32.totalorder %s20, 1
      %p85 = por %p83, %p84
      %p86 = scmp.ne.s32.totalorder %s75, %s76
      %p87 = scmp.eq.s32.totalorder %s20, 0
      %p88 = por %p86, %p87
      %p89 = scmp.ne.s32.totalorder %s75, %s76
      %p90 = scmp.eq.s32.totalorder %s21, 1
      %p91 = por %p89, %p90
      %p93 = scmp.ne.s32.totalorder %s76, %s92
      %p94 = scmp.eq.s32.totalorder %s21, 0
      %p95 = por %p93, %p94
      %p96 = scmp.le.s32.totalorder 1, %s15
      %p97 = scmp.lt.s32.totalorder %s15, 3
      %p98 = pnand %p96, %p97
      %p99 = pneg %p98
      // Predicated region
      $region9: #{tpu_custom_call.1} parent=5 // pred_check
        _
      $region10: #{tpu_custom_call.1} parent=5 // pred_check_branch
        %101 = sbr.rel (%p98) target = $region12
      $region11: #{tpu_custom_call.1} parent=5 // pred_region
        %s102 = ssub.s32 %s15, 1
        // Predicated region
        $region13: #{tpu_custom_call.1} parent=11 // pred_check
          %p103 = pneg %p62
        $region14: #{tpu_custom_call.1} parent=11 // pred_check_branch
          %105 = sbr.rel (%p103) target = $region16
        $region15: #{tpu_custom_call.1} parent=11 // pred_region
          %s107 = ssub.s32 2048, 2048
          %108 = vsyncadd [#allocation6], %s107
          %s109 = sshll.u32 [#allocation5], 4
          %s110 = int_to_ptr.vmem [resolvable:$true] %s109
          %115 = dma.hbm_to_vmem [thread:$0]  %s1, 2048, %s110, [#allocation6], 128, 128, 8
        $region16: #{tpu_custom_call.1} parent=11 // pred_fallthru
          _
      $region12: #{tpu_custom_call.1} parent=5 // pred_fallthru
        _
      %p116 = scmp.lt.s32.totalorder %s15, 2
      // Predicated region
      $region17: #{tpu_custom_call.1} parent=5 // pred_check
        %p117 = pneg %p116
      $region18: #{tpu_custom_call.1} parent=5 // pred_check_branch
        %119 = sbr.rel (%p117) target = $region20
      $region19: #{tpu_custom_call.1} parent=5 // pred_region
        // Predicated region
        $region21: #{tpu_custom_call.1} parent=19 // pred_check
          %p120 = pneg %p35
        $region22: #{tpu_custom_call.1} parent=19 // pred_check_branch
          %122 = sbr.rel (%p120) target = $region24
        $region23: #{tpu_custom_call.1} parent=19 // pred_region
          %s123 = sand.u32 %s25, 1
          %s124 = scalar_lea.sflag [#allocation3], %s123
          %s125 = sand.u32 %s25, 1
          %s126 = smul.addr %s125, 256
          %s127 = scalar_lea.vmem [#allocation2], %s126
          %s128 = smul.u32 32, %s15
          %s130 = ssub.s32 4096, 4096
          %131 = vsyncadd %s124, %s130
          %s132 = smul.addr %s128, 128
          %s133 = scalar_lea.hbm %s0, %s132
          %s134 = sshll.u32 %s127, 4
          %s135 = int_to_ptr.vmem [resolvable:$true] %s134
          %140 = dma.hbm_to_vmem [thread:$0]  %s133, 4096, %s135, %s124, 128, 128, 8
        $region24: #{tpu_custom_call.1} parent=19 // pred_fallthru
          _
      $region20: #{tpu_custom_call.1} parent=5 // pred_fallthru
        _
      %p141 = scmp.le.s32.totalorder 1, %s15
      %p142 = scmp.lt.s32.totalorder %s15, 3
      %p143 = pnand %p141, %p142
      %p144 = pneg %p143
      // Predicated region
      $region25: #{tpu_custom_call.1} parent=5 // pred_check
        _
      $region26: #{tpu_custom_call.1} parent=5 // pred_check_branch
        %146 = sbr.rel (%p143) target = $region28
      $region27: #{tpu_custom_call.1} parent=5 // pred_region
        %s147 = ssub.s32 %s15, 1
        %s148 = sand.u32 %s28, 1
        %s149 = scalar_lea.sflag [#allocation3], %s148
        %s150 = sand.u32 %s28, 1
        %s151 = smul.addr %s150, 256
        %s152 = scalar_lea.vmem [#allocation2], %s151
        // Predicated region
        $region29: #{tpu_custom_call.1} parent=27 // pred_check
          %p153 = pneg %p41
        $region30: #{tpu_custom_call.1} parent=27 // pred_check_branch
          %155 = sbr.rel (%p153) target = $region32
        $region31: #{tpu_custom_call.1} parent=27 // pred_region
          %156 = dma.done %s149, 4096
        $region32: #{tpu_custom_call.1} parent=27 // pred_fallthru
          _
        // Predicated region
        $region33: #{tpu_custom_call.1} parent=27 // pred_check
          %p157 = pneg %p62
        $region34: #{tpu_custom_call.1} parent=27 // pred_check_branch
          %159 = sbr.rel (%p157) target = $region36
        $region35: #{tpu_custom_call.1} parent=27 // pred_region
          %160 = dma.done [#allocation6], 2048
        $region36: #{tpu_custom_call.1} parent=27 // pred_fallthru
          _
        %s161 = sand.u32 %s28, 1
        %s162 = scalar_lea.sflag [#allocation3], %s161
        %s163 = sand.u32 %s28, 1
        %s164 = smul.addr %s163, 256
        %s165 = scalar_lea.vmem [#allocation2], %s164
        %p166 = pneg %p41
        %p167 = pneg %p38
        %p168 = pneg %p62
        %p169 = pneg %p59
        %p170 = pneg %p88
        %p171 = pneg %p85
        %s172 = sand.u32 %s75, 1
        %s173 = scalar_lea.sflag [#allocation4], %s172
        %s174 = sand.u32 %s75, 1
        %s175 = smul.addr %s174, 128
        %s176 = scalar_lea.vmem [#allocation7], %s175
        %s177 = smul.u32 32, %s20
        %s178 = smul.u32 32, %s20
        %v180 = vld [vmem:[%s152] sm:$0xff]
        %v181 = vld [vmem:[%s152 + $0x8] sm:$0xff]
        %v182 = vld [vmem:[%s152 + $0x10] sm:$0xff]
        %v183 = vld [vmem:[%s152 + $0x18] sm:$0xff]
        %v184 = vld [vmem:[%s152 + $0x20] sm:$0xff]
        %v185 = vld [vmem:[%s152 + $0x28] sm:$0xff]
        %v186 = vld [vmem:[%s152 + $0x30] sm:$0xff]
        %v187 = vld [vmem:[%s152 + $0x38] sm:$0xff]
        %v188 = vld [vmem:[%s152 + $0x40] sm:$0xff]
        %v189 = vld [vmem:[%s152 + $0x48] sm:$0xff]
        %v190 = vld [vmem:[%s152 + $0x50] sm:$0xff]
        %v191 = vld [vmem:[%s152 + $0x58] sm:$0xff]
        %v192 = vld [vmem:[%s152 + $0x60] sm:$0xff]
        %v193 = vld [vmem:[%s152 + $0x68] sm:$0xff]
        %v194 = vld [vmem:[%s152 + $0x70] sm:$0xff]
        %v195 = vld [vmem:[%s152 + $0x78] sm:$0xff]
        %v196 = vld [vmem:[%s152 + $0x80] sm:$0xff]
        %v197 = vld [vmem:[%s152 + $0x88] sm:$0xff]
        %v198 = vld [vmem:[%s152 + $0x90] sm:$0xff]
        %v199 = vld [vmem:[%s152 + $0x98] sm:$0xff]
        %v200 = vld [vmem:[%s152 + $0xa0] sm:$0xff]
        %v201 = vld [vmem:[%s152 + $0xa8] sm:$0xff]
        %v202 = vld [vmem:[%s152 + $0xb0] sm:$0xff]
        %v203 = vld [vmem:[%s152 + $0xb8] sm:$0xff]
        %v204 = vld [vmem:[%s152 + $0xc0] sm:$0xff]
        %v205 = vld [vmem:[%s152 + $0xc8] sm:$0xff]
        %v206 = vld [vmem:[%s152 + $0xd0] sm:$0xff]
        %v207 = vld [vmem:[%s152 + $0xd8] sm:$0xff]
        %v208 = vld [vmem:[%s152 + $0xe0] sm:$0xff]
        %v209 = vld [vmem:[%s152 + $0xe8] sm:$0xff]
        %v210 = vld [vmem:[%s152 + $0xf0] sm:$0xff]
        %v211 = vld [vmem:[%s152 + $0xf8] sm:$0xff]
        %v212 = vpack.c.bf16 %v181, %v180
        %v213 = vpack.c.bf16 %v183, %v182
        %v214 = vpack.c.bf16 %v185, %v184
        %v215 = vpack.c.bf16 %v187, %v186
        %v216 = vpack.c.bf16 %v189, %v188
        %v217 = vpack.c.bf16 %v191, %v190
        %v218 = vpack.c.bf16 %v193, %v192
        %v219 = vpack.c.bf16 %v195, %v194
        %v220 = vpack.c.bf16 %v197, %v196
        %v221 = vpack.c.bf16 %v199, %v198
        %v222 = vpack.c.bf16 %v201, %v200
        %v223 = vpack.c.bf16 %v203, %v202
        %v224 = vpack.c.bf16 %v205, %v204
        %v225 = vpack.c.bf16 %v207, %v206
        %v226 = vpack.c.bf16 %v209, %v208
        %v227 = vpack.c.bf16 %v211, %v210
        %v228 = vld [vmem:[#allocation5] sm:$0xff]
        %v229 = vld [vmem:[#allocation5 + $0x8] sm:$0xff]
        %v230 = vld [vmem:[#allocation5 + $0x10] sm:$0xff]
        %v231 = vld [vmem:[#allocation5 + $0x18] sm:$0xff]
        %v232 = vld [vmem:[#allocation5 + $0x20] sm:$0xff]
        %v233 = vld [vmem:[#allocation5 + $0x28] sm:$0xff]
        %v234 = vld [vmem:[#allocation5 + $0x30] sm:$0xff]
        %v235 = vld [vmem:[#allocation5 + $0x38] sm:$0xff]
        %v236 = vld [vmem:[#allocation5 + $0x40] sm:$0xff]
        %v237 = vld [vmem:[#allocation5 + $0x48] sm:$0xff]
        %v238 = vld [vmem:[#allocation5 + $0x50] sm:$0xff]
        %v239 = vld [vmem:[#allocation5 + $0x58] sm:$0xff]
        %v240 = vld [vmem:[#allocation5 + $0x60] sm:$0xff]
        %v241 = vld [vmem:[#allocation5 + $0x68] sm:$0xff]
        %v242 = vld [vmem:[#allocation5 + $0x70] sm:$0xff]
        %v243 = vld [vmem:[#allocation5 + $0x78] sm:$0xff]
        %v244 = vpack.c.bf16 %v229, %v228
        %v245 = vpack.c.bf16 %v231, %v230
        %v246 = vpack.c.bf16 %v233, %v232
        %v247 = vpack.c.bf16 %v235, %v234
        %v248 = vpack.c.bf16 %v237, %v236
        %v249 = vpack.c.bf16 %v239, %v238
        %v250 = vpack.c.bf16 %v241, %v240
        %v251 = vpack.c.bf16 %v243, %v242
        %252 = vmatprep.subr.bf16.mxu0 0
        %253 = vmatpush1.bf16.msra.mxu0 %v244
        %254 = vmatprep.subr.bf16.mxu0 0
        %255 = vmatpush1.bf16.msra.mxu0 %v245
        %256 = vmatprep.subr.bf16.mxu0 0
        %257 = vmatpush1.bf16.msra.mxu0 %v246
        %258 = vmatprep.subr.bf16.mxu0 0
        %259 = vmatpush1.bf16.msra.mxu0 %v247
        %260 = vmatprep.subr.bf16.mxu0 0
        %261 = vmatpush1.bf16.msra.mxu0 %v248
        %262 = vmatprep.subr.bf16.mxu0 0
        %263 = vmatpush1.bf16.msra.mxu0 %v249
        %264 = vmatprep.subr.bf16.mxu0 0
        %265 = vmatpush1.bf16.msra.mxu0 %v250
        %266 = vmatprep.subr.bf16.mxu0 0
        %267 = vmatpush1.bf16.msra.mxu0 %v251
        %268 = vmatprep.subr.bf16.mxu0 0
        %269 = vmatpush1.bf16.msra.mxu0 0
        %270 = vmatprep.subr.bf16.mxu0 0
        %271 = vmatpush1.bf16.msra.mxu0 0
        %272 = vmatprep.subr.bf16.mxu0 0
        %273 = vmatpush1.bf16.msra.mxu0 0
        %274 = vmatprep.subr.bf16.mxu0 0
        %275 = vmatpush1.bf16.msra.mxu0 0
        %276 = vmatprep.subr.bf16.mxu0 0
        %277 = vmatpush1.bf16.msra.mxu0 0
        %278 = vmatprep.subr.bf16.mxu0 0
        %279 = vmatpush1.bf16.msra.mxu0 0
        %280 = vmatprep.subr.bf16.mxu0 0
        %281 = vmatpush1.bf16.msra.mxu0 0
        %282 = vmatprep.subr.bf16.mxu0 0
        %283 = vmatpush1.bf16.msra.mxu0 0
        %284 = vmatprep.mubr.bf16.mxu0 0
        %285 = vmatmul.mubr.bf16.gmra.mrb[0].mxu0 %v212
        %v286 = vpop.f32.mrb[0].mxu0
        %v287 = vadd.f32 0.0, %v286
        %v288 = vpop.f32.mrb[0].mxu0
        %v289 = vpop.f32.mrb[0].mxu0
        %v290 = vadd.f32 0.0, %v289
        %v291 = vpop.f32.mrb[0].mxu0
        %292 = vmatprep.mubr.bf16.mxu0 0
        %293 = vmatmul.mubr.bf16.gmra.mrb[0].mxu0 %v213
        %v294 = vpop.f32.mrb[0].mxu0
        %v295 = vadd.f32 0.0, %v294
        %v296 = vpop.f32.mrb[0].mxu0
        %v297 = vpop.f32.mrb[0].mxu0
        %v298 = vadd.f32 0.0, %v297
        %v299 = vpop.f32.mrb[0].mxu0
        %300 = vmatprep.mubr.bf16.mxu0 0
        %301 = vmatmul.mubr.bf16.gmra.mrb[0].mxu0 %v214
        %v302 = vpop.f32.mrb[0].mxu0
        %v303 = vadd.f32 0.0, %v302
        %v304 = vpop.f32.mrb[0].mxu0
        %v305 = vpop.f32.mrb[0].mxu0
        %v306 = vadd.f32 0.0, %v305
        %v307 = vpop.f32.mrb[0].mxu0
        %308 = vmatprep.mubr.bf16.mxu0 0
        %309 = vmatmul.mubr.bf16.gmra.mrb[0].mxu0 %v215
        %v310 = vpop.f32.mrb[0].mxu0
        %v311 = vadd.f32 0.0, %v310
        %v312 = vpop.f32.mrb[0].mxu0
        %v313 = vpop.f32.mrb[0].mxu0
        %v314 = vadd.f32 0.0, %v313
        %v315 = vpop.f32.mrb[0].mxu0
        %316 = vmatprep.mubr.bf16.mxu0 0
        %317 = vmatmul.mubr.bf16.gmra.mrb[0].mxu0 %v216
        %v318 = vpop.f32.mrb[0].mxu0
        %v319 = vadd.f32 0.0, %v318
        %v320 = vpop.f32.mrb[0].mxu0
        %v321 = vpop.f32.mrb[0].mxu0
        %v322 = vadd.f32 0.0, %v321
        %v323 = vpop.f32.mrb[0].mxu0
        %324 = vmatprep.mubr.bf16.mxu0 0
        %325 = vmatmul.mubr.bf16.gmra.mrb[0].mxu0 %v217
        %v326 = vpop.f32.mrb[0].mxu0
        %v327 = vadd.f32 0.0, %v326
        %v328 = vpop.f32.mrb[0].mxu0
        %v329 = vpop.f32.mrb[0].mxu0
        %v330 = vadd.f32 0.0, %v329
        %v331 = vpop.f32.mrb[0].mxu0
        %332 = vmatprep.mubr.bf16.mxu0 0
        %333 = vmatmul.mubr.bf16.gmra.mrb[0].mxu0 %v218
        %v334 = vpop.f32.mrb[0].mxu0
        %v335 = vadd.f32 0.0, %v334
        %v336 = vpop.f32.mrb[0].mxu0
        %v337 = vpop.f32.mrb[0].mxu0
        %v338 = vadd.f32 0.0, %v337
        %v339 = vpop.f32.mrb[0].mxu0
        %340 = vmatprep.mubr.bf16.mxu0 0
        %341 = vmatmul.mubr.bf16.gmra.mrb[0].mxu0 %v219
        %v342 = vpop.f32.mrb[0].mxu0
        %v343 = vadd.f32 0.0, %v342
        %v344 = vpop.f32.mrb[0].mxu0
        %v345 = vpop.f32.mrb[0].mxu0
        %v346 = vadd.f32 0.0, %v345
        %v347 = vpop.f32.mrb[0].mxu0
        %348 = vmatprep.mubr.bf16.mxu0 0
        %349 = vmatmul.mubr.bf16.gmra.mrb[0].mxu0 %v220
        %v350 = vpop.f32.mrb[0].mxu0
        %v351 = vadd.f32 0.0, %v350
        %v352 = vpop.f32.mrb[0].mxu0
        %v353 = vpop.f32.mrb[0].mxu0
        %v354 = vadd.f32 0.0, %v353
        %v355 = vpop.f32.mrb[0].mxu0
        %356 = vmatprep.mubr.bf16.mxu0 0
        %357 = vmatmul.mubr.bf16.gmra.mrb[0].mxu0 %v221
        %v358 = vpop.f32.mrb[0].mxu0
        %v359 = vadd.f32 0.0, %v358
        %v360 = vpop.f32.mrb[0].mxu0
        %v361 = vpop.f32.mrb[0].mxu0
        %v362 = vadd.f32 0.0, %v361
        %v363 = vpop.f32.mrb[0].mxu0
        %364 = vmatprep.mubr.bf16.mxu0 0
        %365 = vmatmul.mubr.bf16.gmra.mrb[0].mxu0 %v222
        %v366 = vpop.f32.mrb[0].mxu0
        %v367 = vadd.f32 0.0, %v366
        %v368 = vpop.f32.mrb[0].mxu0
        %v369 = vpop.f32.mrb[0].mxu0
        %v370 = vadd.f32 0.0, %v369
        %v371 = vpop.f32.mrb[0].mxu0
        %372 = vmatprep.mubr.bf16.mxu0 0
        %373 = vmatmul.mubr.bf16.gmra.mrb[0].mxu0 %v223
        %v374 = vpop.f32.mrb[0].mxu0
        %v375 = vadd.f32 0.0, %v374
        %v376 = vpop.f32.mrb[0].mxu0
        %v377 = vpop.f32.mrb[0].mxu0
        %v378 = vadd.f32 0.0, %v377
        %v379 = vpop.f32.mrb[0].mxu0
        %380 = vmatprep.mubr.bf16.mxu0 0
        %381 = vmatmul.mubr.bf16.gmra.mrb[0].mxu0 %v224
        %v382 = vpop.f32.mrb[0].mxu0
        %v383 = vadd.f32 0.0, %v382
        %v384 = vpop.f32.mrb[0].mxu0
        %v385 = vpop.f32.mrb[0].mxu0
        %v386 = vadd.f32 0.0, %v385
        %v387 = vpop.f32.mrb[0].mxu0
        %388 = vmatprep.mubr.bf16.mxu0 0
        %389 = vmatmul.mubr.bf16.gmra.mrb[0].mxu0 %v225
        %v390 = vpop.f32.mrb[0].mxu0
        %v391 = vadd.f32 0.0, %v390
        %v392 = vpop.f32.mrb[0].mxu0
        %v393 = vpop.f32.mrb[0].mxu0
        %v394 = vadd.f32 0.0, %v393
        %v395 = vpop.f32.mrb[0].mxu0
        %396 = vmatprep.mubr.bf16.mxu0 0
        %397 = vmatmul.mubr.bf16.gmra.mrb[0].mxu0 %v226
        %v398 = vpop.f32.mrb[0].mxu0
        %v399 = vadd.f32 0.0, %v398
        %v400 = vpop.f32.mrb[0].mxu0
        %v401 = vpop.f32.mrb[0].mxu0
        %v402 = vadd.f32 0.0, %v401
        %v403 = vpop.f32.mrb[0].mxu0
        %404 = vmatprep.mubr.bf16.mxu0 0
        %405 = vmatmul.mubr.bf16.gmra.mrb[0].mxu0 %v227
        %v406 = vpop.f32.mrb[0].mxu0
        %v407 = vadd.f32 0.0, %v406
        %v408 = vpop.f32.mrb[0].mxu0
        %v409 = vpop.f32.mrb[0].mxu0
        %v410 = vadd.f32 0.0, %v409
        %v411 = vpop.f32.mrb[0].mxu0
        %412 = vdwg.mxu0
        %v413 = vpack.c.bf16 %v290, %v287
        %v414 = vpack.c.bf16 %v298, %v295
        %v415 = vpack.c.bf16 %v306, %v303
        %v416 = vpack.c.bf16 %v314, %v311
        %v417 = vpack.c.bf16 %v322, %v319
        %v418 = vpack.c.bf16 %v330, %v327
        %v419 = vpack.c.bf16 %v338, %v335
        %v420 = vpack.c.bf16 %v346, %v343
        %v421 = vpack.c.bf16 %v354, %v351
        %v422 = vpack.c.bf16 %v362, %v359
        %v423 = vpack.c.bf16 %v370, %v367
        %v424 = vpack.c.bf16 %v378, %v375
        %v425 = vpack.c.bf16 %v386, %v383
        %v426 = vpack.c.bf16 %v394, %v391
        %v427 = vpack.c.bf16 %v402, %v399
        %v428 = vpack.c.bf16 %v410, %v407
        %v445 = vunpack.c.l.b16 %v413
        %v446 = vunpack.c.h.b16 %v413
        %v447 = vunpack.c.l.b16 %v414
        %v448 = vunpack.c.h.b16 %v414
        %v449 = vunpack.c.l.b16 %v415
        %v450 = vunpack.c.h.b16 %v415
        %v451 = vunpack.c.l.b16 %v416
        %v452 = vunpack.c.h.b16 %v416
        %v453 = vunpack.c.l.b16 %v417
        %v454 = vunpack.c.h.b16 %v417
        %v455 = vunpack.c.l.b16 %v418
        %v456 = vunpack.c.h.b16 %v418
        %v457 = vunpack.c.l.b16 %v419
        %v458 = vunpack.c.h.b16 %v419
        %v459 = vunpack.c.l.b16 %v420
        %v460 = vunpack.c.h.b16 %v420
        %v461 = vunpack.c.l.b16 %v421
        %v462 = vunpack.c.h.b16 %v421
        %v463 = vunpack.c.l.b16 %v422
        %v464 = vunpack.c.h.b16 %v422
        %v465 = vunpack.c.l.b16 %v423
        %v466 = vunpack.c.h.b16 %v423
        %v467 = vunpack.c.l.b16 %v424
        %v468 = vunpack.c.h.b16 %v424
        %v469 = vunpack.c.l.b16 %v425
        %v470 = vunpack.c.h.b16 %v425
        %v471 = vunpack.c.l.b16 %v426
        %v472 = vunpack.c.h.b16 %v426
        %v473 = vunpack.c.l.b16 %v427
        %v474 = vunpack.c.h.b16 %v427
        %v475 = vunpack.c.l.b16 %v428
        %v476 = vunpack.c.h.b16 %v428
        %v477 = vpack.c.b16 %v445, %v445
        %v478 = vpack.c.b16 %v446, %v446
        %v479 = vpack.c.b16 %v447, %v447
        %v480 = vpack.c.b16 %v448, %v448
        %v481 = vpack.c.b16 %v449, %v449
        %v482 = vpack.c.b16 %v450, %v450
        %v483 = vpack.c.b16 %v451, %v451
        %v484 = vpack.c.b16 %v452, %v452
        %v485 = vpack.c.b16 %v453, %v453
        %v486 = vpack.c.b16 %v454, %v454
        %v487 = vpack.c.b16 %v455, %v455
        %v488 = vpack.c.b16 %v456, %v456
        %v489 = vpack.c.b16 %v457, %v457
        %v490 = vpack.c.b16 %v458, %v458
        %v491 = vpack.c.b16 %v459, %v459
        %v492 = vpack.c.b16 %v460, %v460
        %v493 = vpack.c.b16 %v461, %v461
        %v494 = vpack.c.b16 %v462, %v462
        %v495 = vpack.c.b16 %v463, %v463
        %v496 = vpack.c.b16 %v464, %v464
        %v497 = vpack.c.b16 %v465, %v465
        %v498 = vpack.c.b16 %v466, %v466
        %v499 = vpack.c.b16 %v467, %v467
        %v500 = vpack.c.b16 %v468, %v468
        %v501 = vpack.c.b16 %v469, %v469
        %v502 = vpack.c.b16 %v470, %v470
        %v503 = vpack.c.b16 %v471, %v471
        %v504 = vpack.c.b16 %v472, %v472
        %v505 = vpack.c.b16 %v473, %v473
        %v506 = vpack.c.b16 %v474, %v474
        %v507 = vpack.c.b16 %v475, %v475
        %v508 = vpack.c.b16 %v476, %v476
        %541 = vst [vmem:[%s176] sm:$0xf] %v477
        %542 = vst [vmem:[%s176 + $0x4] sm:$0xf] %v478
        %543 = vst [vmem:[%s176 + $0x8] sm:$0xf] %v479
        %544 = vst [vmem:[%s176 + $0xc] sm:$0xf] %v480
        %545 = vst [vmem:[%s176 + $0x10] sm:$0xf] %v481
        %546 = vst [vmem:[%s176 + $0x14] sm:$0xf] %v482
        %547 = vst [vmem:[%s176 + $0x18] sm:$0xf] %v483
        %548 = vst [vmem:[%s176 + $0x1c] sm:$0xf] %v484
        %549 = vst [vmem:[%s176 + $0x20] sm:$0xf] %v485
        %550 = vst [vmem:[%s176 + $0x24] sm:$0xf] %v486
        %551 = vst [vmem:[%s176 + $0x28] sm:$0xf] %v487
        %552 = vst [vmem:[%s176 + $0x2c] sm:$0xf] %v488
        %553 = vst [vmem:[%s176 + $0x30] sm:$0xf] %v489
        %554 = vst [vmem:[%s176 + $0x34] sm:$0xf] %v490
        %555 = vst [vmem:[%s176 + $0x38] sm:$0xf] %v491
        %556 = vst [vmem:[%s176 + $0x3c] sm:$0xf] %v492
        %557 = vst [vmem:[%s176 + $0x40] sm:$0xf] %v493
        %558 = vst [vmem:[%s176 + $0x44] sm:$0xf] %v494
        %559 = vst [vmem:[%s176 + $0x48] sm:$0xf] %v495
        %560 = vst [vmem:[%s176 + $0x4c] sm:$0xf] %v496
        %561 = vst [vmem:[%s176 + $0x50] sm:$0xf] %v497
        %562 = vst [vmem:[%s176 + $0x54] sm:$0xf] %v498
        %563 = vst [vmem:[%s176 + $0x58] sm:$0xf] %v499
        %564 = vst [vmem:[%s176 + $0x5c] sm:$0xf] %v500
        %565 = vst [vmem:[%s176 + $0x60] sm:$0xf] %v501
        %566 = vst [vmem:[%s176 + $0x64] sm:$0xf] %v502
        %567 = vst [vmem:[%s176 + $0x68] sm:$0xf] %v503
        %568 = vst [vmem:[%s176 + $0x6c] sm:$0xf] %v504
        %569 = vst [vmem:[%s176 + $0x70] sm:$0xf] %v505
        %570 = vst [vmem:[%s176 + $0x74] sm:$0xf] %v506
        %571 = vst [vmem:[%s176 + $0x78] sm:$0xf] %v507
        %572 = vst [vmem:[%s176 + $0x7c] sm:$0xf] %v508
        %s573 = sand.u32 %s75, 1
        %s574 = scalar_lea.sflag [#allocation4], %s573
        %s575 = sand.u32 %s75, 1
        %s576 = smul.addr %s575, 128
        %s577 = scalar_lea.vmem [#allocation7], %s576
        // Predicated region
        $region37: #{tpu_custom_call.1} parent=27 // pred_check
          %p578 = pneg %p85
        $region38: #{tpu_custom_call.1} parent=27 // pred_check_branch
          %580 = sbr.rel (%p578) target = $region40
        $region39: #{tpu_custom_call.1} parent=27 // pred_region
          %s581 = smul.u32 32, %s20
          %s583 = ssub.s32 2048, 2048
          %584 = vsyncadd %s574, %s583
          %s585 = smul.addr %s581, 64
          %s586 = scalar_lea.hbm %s2, %s585
          %s587 = sshll.u32 %s577, 4
          %s588 = int_to_ptr.vmem [resolvable:$true] %s587
          %593 = dma.vmem_to_hbm [thread:$0]  %s588, 2048, %s586, %s574, 64, 64, 4
        $region40: #{tpu_custom_call.1} parent=27 // pred_fallthru
          _
      $region28: #{tpu_custom_call.1} parent=5 // pred_fallthru
        _
      %p594 = scmp.le.s32.totalorder 2, %s15
      // Predicated region
      $region41: #{tpu_custom_call.1} parent=5 // pred_check
        %p595 = pneg %p594
      $region42: #{tpu_custom_call.1} parent=5 // pred_check_branch
        %597 = sbr.rel (%p595) target = $region44
      $region43: #{tpu_custom_call.1} parent=5 // pred_region
        %s598 = ssub.s32 %s15, 2
        // Predicated region
        $region45: #{tpu_custom_call.1} parent=43 // pred_check
          %p599 = pneg %p91
        $region46: #{tpu_custom_call.1} parent=43 // pred_check_branch
          %601 = sbr.rel (%p599) target = $region48
        $region47: #{tpu_custom_call.1} parent=43 // pred_region
          %s602 = sand.u32 %s76, 1
          %s603 = scalar_lea.sflag [#allocation4], %s602
          %s604 = sand.u32 %s76, 1
          %s605 = smul.addr %s604, 128
          %s606 = scalar_lea.vmem [#allocation7], %s605
          %607 = dma.done %s603, 2048
        $region48: #{tpu_custom_call.1} parent=43 // pred_fallthru
          _
      $region44: #{tpu_custom_call.1} parent=5 // pred_fallthru
        _
    $region6: #{tpu_custom_call.1} parent=1 // loop_footer
      %s19 = sadd.s32 1, %s15
    $region7: #{tpu_custom_call.1} parent=1 // loop_footer_branch
      %14 = sbr.rel target = $region3
    $region8: #{tpu_custom_call.1} parent=1 // loop_exit
      _
    %608 = vsyncpa [#allocation3], 1
    %s609 = scalar_lea.sflag [#allocation3], 1
    %610 = vsyncpa %s609, 1
    %611 = vsyncpa [#allocation6], 1
    %612 = vsyncpa [#allocation4], 1
    %s613 = scalar_lea.sflag [#allocation4], 1
    %614 = vsyncpa %s613, 1

</llo_original>
